<compile_context>
chip_gen: v7x
topology: tpu7x:2x2x1
jax: 0.10.0
libtpu: 0.0.40
codegen_flags: <defaults>
</compile_context>

<pallas_src>
import functools

import jax
import jax.numpy as jnp
from jax.experimental import pallas as pl
from jax.experimental.pallas import tpu as pltpu

BN_EPS = 1e-5


def _round_up(v, m):
    return (v + m - 1) // m * m


def _cdiv(a, b):
    return -(-a // b)


def _pass2_rows(gm, tm, target=2048):
    """Largest multiple of tm that divides gm*tm, <= target, keeping >=2 steps."""
    best = 1
    for c in range(1, gm + 1):
        if c * tm > target:
            break
        if gm % c:
            continue
        if gm >= 2 and gm // c < 2:
            continue
        best = c
    return best * tm


def _sage_agg_proj_kernel(gk, a_ref, xn_ref, xr_ref, invdeg_ref, mask_ref,
                          wl_ref, wr_ref, b_ref, h_ref, stats_ref, acc_ref):
    """Pass 1: tiled A@X sum aggregation + fused SAGE projection + BN partials.

    Grid: (row tiles i ["parallel"], K tiles k ["arbitrary", reduction, last]).

    a_ref      : (tm, tk)  int8 adjacency count tile  A[i, k]
    xn_ref     : (tk, F)   neighbor features (K-streamed, compute dtype)
    xr_ref     : (tm, F)   root features (f32)
    invdeg_ref : (tm, 1)   f32 1/deg (0 for isolated / padding rows)
    mask_ref   : (tm, 1)   f32 1.0 for valid rows, 0.0 for padding rows
    wl_ref     : (F, Hp)   Wl^T (neighbor path), wr_ref: (F, Hp) Wr^T (root)
    b_ref      : (1, Hp)   lin_l bias
    h_ref      : (tm, Hp)  pre-BN activations (written at last k)
    stats_ref  : (2, Hp)   per-row-tile [sum ; sum-of-squares]
    acc_ref    : (tm, F)   f32 neighbor-sum accumulator (VMEM scratch)

    NOTE: pl.program_id is only read at the kernel top level (never inside a
    pl.when body) -- nested cond branches do not substitute it.
    """
    k = pl.program_id(1)

    @pl.when(k == 0)
    def _init():
        acc_ref[...] = jnp.zeros_like(acc_ref)

    # int8 -> compute dtype upcast on the VPU, then one MXU dot per K tile.
    a = a_ref[...].astype(xn_ref.dtype)
    acc_ref[...] += jnp.dot(a, xn_ref[...], preferred_element_type=jnp.float32)

    @pl.when(k == gk - 1)
    def _epilogue():
        # Mean aggregation: fold 1/deg in f32 (exact; adjacency stays binary).
        agg = acc_ref[...] * invdeg_ref[...]
        h = (jnp.dot(agg, wl_ref[...], preferred_element_type=jnp.float32)
             + jnp.dot(xr_ref[...], wr_ref[...],
                       preferred_element_type=jnp.float32)
             + b_ref[...])
        h_ref[...] = h.astype(h_ref.dtype)
        # BN partial statistics for this row tile; padding rows masked out.
        hm = h * mask_ref[...]
        stats_ref[0:1, :] = jnp.sum(hm, axis=0, keepdims=True)
        stats_ref[1:2, :] = jnp.sum(hm * hm, axis=0, keepdims=True)


def _bn_relu_kernel(inv_n, h_ref, stats_ref, gamma_ref, beta_ref, out_ref):
    """Pass 2: training-mode BatchNorm1d folded to one FMA (+ ReLU), f32 math."""
    mean = stats_ref[0:1, :] * inv_n
    ex2 = stats_ref[1:2, :] * inv_n
    var = jnp.maximum(ex2 - mean * mean, 0.0)
    scale = gamma_ref[...] * jax.lax.rsqrt(var + BN_EPS)
    shift = beta_ref[...] - mean * scale
    h = h_ref[...].astype(jnp.float32)
    out_ref[...] = jnp.maximum(h * scale + shift, 0.0)


def custom_sage_layer(x, edge_index, edge_attr, batch, params, *,
                      tile_m=256, tile_k=8192, compute_dtype=jnp.bfloat16):
    """Forward of CustomSageLayer. Returns (out, edge_index, edge_attr, batch).

    compute_dtype controls the feature-stream / inter-pass dtype (bf16 is the
    recommended fast path on every TPU generation; f32 reproduces the PyTorch
    module bit-for-bit up to f32 rounding).  The adjacency is always int8.
    """
    n_nodes, fd = x.shape
    hidden_dim = params["w_l"].shape[0]
    hp = _round_up(hidden_dim, 128)                    # lane-dense h / out slabs
    h_dtype = jnp.float32 if compute_dtype == jnp.float32 else jnp.bfloat16

    # ---- tiling -----------------------------------------------------------
    # Row (M) axis: int8 adjacency sublane minimum is 32.  Keep >= 2 row tiles
    # when possible so the "parallel" axis shards across both TCs (v7x/megacore).
    gm = _cdiv(n_nodes, tile_m)
    if gm == 1 and n_nodes >= 64:
        gm = 2
    tm = _round_up(_cdiv(n_nodes, gm), 32)
    n_pad_m = gm * tm
    # K axis: contiguous HBM axis of the adjacency -> prefer big tk.
    gk = _cdiv(n_nodes, tile_k)
    tk = _round_up(_cdiv(n_nodes, gk), 128)
    n_pad_k = gk * tk

    # ---- O(E) glue: int8 count adjacency + f32 inverse degree --------------
    src, dst = edge_index[0], edge_index[1]
    adj = jnp.zeros((n_pad_m, n_pad_k), jnp.int32).at[dst, src].add(1)
    adj = adj.astype(jnp.int8)                         # 1 B/entry HBM stream
    deg = jnp.zeros((n_nodes,), jnp.float32).at[dst].add(1.0)
    inv_deg = jnp.where(deg > 0, 1.0 / jnp.maximum(deg, 1.0), 0.0)
    inv_deg_p = jnp.zeros((n_pad_m, 1), jnp.float32).at[:n_nodes, 0].set(inv_deg)
    mask_p = jnp.zeros((n_pad_m, 1), jnp.float32).at[:n_nodes, :].set(1.0)

    x32 = x.astype(jnp.float32)
    x_nb = jnp.zeros((n_pad_k, fd), compute_dtype).at[:n_nodes].set(
        x.astype(compute_dtype))                       # K-streamed neighbors
    x_rt = jnp.zeros((n_pad_m, fd), jnp.float32).at[:n_nodes].set(x32)  # roots

    pad_h = lambda a: jnp.pad(a.astype(jnp.float32),
                              ((0, 0), (0, hp - hidden_dim)))
    w_l = pad_h(params["w_l"].T)                       # (F, Hp) neighbor path
    w_r = pad_h(params["w_r"].T)                       # (F, Hp) root path
    b_l = pad_h(params["b_l"].reshape(1, hidden_dim))
    gamma = pad_h(params["bn_gamma"].reshape(1, hidden_dim))
    beta = pad_h(params["bn_beta"].reshape(1, hidden_dim))

    # ---- explicit VMEM budget (scoped defaults bind before physical VMEM) --
    xb = jnp.dtype(compute_dtype).itemsize
    hb = jnp.dtype(h_dtype).itemsize
    vmem_bytes = (2 * tm * tk * 1                      # A double buffer (int8)
                  + 2 * tk * fd * xb                   # neighbor X stream
                  + 2 * tm * fd * 4 + 4 * tm * 4       # roots, 1/deg, mask
                  + 2 * (2 * fd * hp + hp) * 4         # weights + bias
                  + 2 * tm * hp * hb + 4 * hp * 4      # h + stats outputs
                  + tm * fd * 4)                       # accumulator scratch
    vmem_limit = int(min(60 * 2**20, max(32 * 2**20, 5 * vmem_bytes // 4)))

    cost = pl.CostEstimate(
        flops=int(2 * n_pad_m * n_pad_k * fd + 4 * n_pad_m * fd * hp),
        transcendentals=0,
        bytes_accessed=int(n_pad_m * n_pad_k + gm * n_pad_k * fd * xb
                           + n_pad_m * (fd * 4 + 8) + n_pad_m * hp * hb
                           + gm * 2 * hp * 4),
    )

    # ---- pass 1: tiled A@X, 1/deg fold, fused projection, BN partials ------
    h_full, stats = pl.pallas_call(
        functools.partial(_sage_agg_proj_kernel, gk),
        out_shape=(jax.ShapeDtypeStruct((n_pad_m, hp), h_dtype),
                   jax.ShapeDtypeStruct((gm, 2, hp), jnp.float32)),
        grid=(gm, gk),
        in_specs=[
            pl.BlockSpec((tm, tk), lambda i, k: (i, k)),   # adjacency (int8)
            pl.BlockSpec((tk, fd), lambda i, k: (k, 0)),   # neighbor features
            pl.BlockSpec((tm, fd), lambda i, k: (i, 0)),   # root features
            pl.BlockSpec((tm, 1), lambda i, k: (i, 0)),    # 1/deg
            pl.BlockSpec((tm, 1), lambda i, k: (i, 0)),    # valid-row mask
            pl.BlockSpec((fd, hp), lambda i, k: (0, 0)),   # Wl^T
            pl.BlockSpec((fd, hp), lambda i, k: (0, 0)),   # Wr^T
            pl.BlockSpec((1, hp), lambda i, k: (0, 0)),    # bias
        ],
        out_specs=(
            pl.BlockSpec((tm, hp), lambda i, k: (i, 0)),
            pl.BlockSpec((None, 2, hp), lambda i, k: (i, 0, 0)),
        ),
        scratch_shapes=[pltpu.VMEM((tm, fd), jnp.float32)],
        compiler_params=pltpu.CompilerParams(
            dimension_semantics=("parallel", "arbitrary"),
            vmem_limit_bytes=vmem_limit),
        cost_estimate=cost,
    )(adj, x_nb, x_rt, inv_deg_p, mask_p, w_l, w_r, b_l)

    # ---- tiny glue reduction of per-tile partials -> global BN stats -------
    stats_tot = jnp.sum(stats, axis=0)                 # (2, Hp)

    # ---- pass 2: folded BN FMA + ReLU over large lane-dense row blocks -----
    tm2 = _pass2_rows(gm, tm, target=2048)
    out_full = pl.pallas_call(
        functools.partial(_bn_relu_kernel, 1.0 / float(n_nodes)),
        out_shape=jax.ShapeDtypeStruct((n_pad_m, hp), jnp.float32),
        grid=(n_pad_m // tm2,),
        in_specs=[
            pl.BlockSpec((tm2, hp), lambda i: (i, 0)),
            pl.BlockSpec((2, hp), lambda i: (0, 0)),
            pl.BlockSpec((1, hp), lambda i: (0, 0)),
            pl.BlockSpec((1, hp), lambda i: (0, 0)),
        ],
        out_specs=pl.BlockSpec((tm2, hp), lambda i: (i, 0)),
        compiler_params=pltpu.CompilerParams(
            dimension_semantics=("parallel",)),
    )(h_full, stats_tot, gamma, beta)

    out = out_full[:n_nodes, :hidden_dim]
    return out, edge_index, edge_attr, batch


def init_params(key, input_dim, hidden_dim):
    """Deterministic synthetic parameters matching SAGEConv + BatchNorm1d shapes."""
    k1, k2, k3 = jax.random.split(key, 3)
    scale = 1.0 / jnp.sqrt(jnp.float32(input_dim))
    return {
        # SAGEConv: lin_l (neighbor path, with bias), lin_r (root path, no bias)
        "w_l": jax.random.uniform(k1, (hidden_dim, input_dim), jnp.float32,
                                  -scale, scale),
        "w_r": jax.random.uniform(k2, (hidden_dim, input_dim), jnp.float32,
                                  -scale, scale),
        "b_l": jax.random.uniform(k3, (hidden_dim,), jnp.float32, -scale, scale),
        # BatchNorm1d affine params (default init)
        "bn_gamma": jnp.ones((hidden_dim,), jnp.float32),
        "bn_beta": jnp.zeros((hidden_dim,), jnp.float32),
    }


def _reference_layer(x, edge_index, params):
    """Pure-JAX scatter-mean reference of SAGEConv + BatchNorm1d(train) + ReLU."""
    n, f = x.shape
    src, dst = edge_index[0], edge_index[1]
    x32 = x.astype(jnp.float32)
    nsum = jnp.zeros((n, f), jnp.float32).at[dst].add(x32[src])
    deg = jnp.zeros((n,), jnp.float32).at[dst].add(1.0)
    agg = jnp.where(deg[:, None] > 0,
                    nsum / jnp.maximum(deg, 1.0)[:, None], 0.0)
    h = agg @ params["w_l"].T + x32 @ params["w_r"].T + params["b_l"]
    mean = jnp.mean(h, axis=0)
    var = jnp.mean((h - mean) ** 2, axis=0)
    y = (h - mean) * jax.lax.rsqrt(var + BN_EPS) * params["bn_gamma"] \
        + params["bn_beta"]
    return jnp.maximum(y, 0.0)


if __name__ == "__main__":
    key = jax.random.PRNGKey(0)
    k_x, k_e, k_a, k_p = jax.random.split(key, 4)

    N_NODES, IN_DIM, HIDDEN_DIM, N_EDGES, EDGE_DIM = 200, 8, 32, 600, 4

    x = jax.random.normal(k_x, (N_NODES, IN_DIM), jnp.float32)
    edge_index = jax.random.randint(k_e, (2, N_EDGES), 0, N_NODES, jnp.int32)
    edge_attr = jax.random.normal(k_a, (N_EDGES, EDGE_DIM), jnp.float32)
    batch = jnp.zeros((N_NODES,), jnp.int32)
    params = init_params(k_p, IN_DIM, HIDDEN_DIM)

    # Exact-math config (f32 features / f32 h); small tiles force the
    # multi-row-tile and multi-K-tile paths (cross-tile BN partial reduction
    # plus the k==0 / k==last accumulator phases and pass-2 row folding).
    out_f32, _, _, _ = custom_sage_layer(
        x, edge_index, edge_attr, batch, params,
        tile_m=64, tile_k=128, compute_dtype=jnp.float32)
    jax.block_until_ready(out_f32)
    assert out_f32.shape == (N_NODES, HIDDEN_DIM)
    assert out_f32.dtype == jnp.float32

    ref = _reference_layer(x, edge_index, params)
    err = float(jnp.max(jnp.abs(out_f32 - ref)))
    assert err < 1e-3, f"f32 kernel mismatch vs reference: {err}"

    # Performance defaults: int8 adjacency + bf16 feature / h stream, big tiles.
    out_fast, _, _, _ = custom_sage_layer(x, edge_index, edge_attr, batch, params)
    jax.block_until_ready(out_fast)
    err_fast = float(jnp.max(jnp.abs(out_fast - out_f32)))
    assert err_fast < 0.2, f"bf16 fast path drifted too far: {err_fast}"

    print("KERNEL_OK")
</pallas_src>

<mosaic_0001>
module attributes {stable_mosaic.version = 11 : i64} {
  func.func @_sage_agg_proj_kernel(%arg0: i32, %arg1: i32, %arg2: memref<64x128xi8, #tpu.memory_space<vmem>>, %arg3: memref<128x8xf32, #tpu.memory_space<vmem>>, %arg4: memref<64x8xf32, #tpu.memory_space<vmem>>, %arg5: memref<64x1xf32, #tpu.memory_space<vmem>>, %arg6: memref<64x1xf32, #tpu.memory_space<vmem>>, %arg7: memref<8x128xf32, #tpu.memory_space<vmem>>, %arg8: memref<8x128xf32, #tpu.memory_space<vmem>>, %arg9: memref<1x128xf32, #tpu.memory_space<vmem>>, %arg10: memref<64x128xf32, #tpu.memory_space<vmem>>, %arg11: memref<1x2x128xf32, #tpu.memory_space<vmem>>, %arg12: memref<64x8xf32, #tpu.memory_space<vmem>>) attributes {dimension_semantics = [#tpu.dimension_semantics<parallel>, #tpu.dimension_semantics<arbitrary>], iteration_bounds = array<i64: 4, 2>, scalar_prefetch = 0 : i64, scratch_operands = 1 : i64, tpu.core_type = #tpu.core_type<tc>, window_params = [{transform_indices = @transform_0, window_bounds = array<i64: 64, 128>}, {transform_indices = @transform_1, window_bounds = array<i64: 128, 8>}, {transform_indices = @transform_2, window_bounds = array<i64: 64, 8>}, {transform_indices = @transform_3, window_bounds = array<i64: 64, 1>}, {transform_indices = @transform_4, window_bounds = array<i64: 64, 1>}, {pipeline_mode = #tpu.pipeline_mode<synchronous>, transform_indices = @transform_5, window_bounds = array<i64: 8, 128>}, {pipeline_mode = #tpu.pipeline_mode<synchronous>, transform_indices = @transform_6, window_bounds = array<i64: 8, 128>}, {pipeline_mode = #tpu.pipeline_mode<synchronous>, transform_indices = @transform_7, window_bounds = array<i64: 1, 128>}, {transform_indices = @transform_8, window_bounds = array<i64: 64, 128>}, {transform_indices = @transform_9, window_bounds = array<i64: 1, 2, 128>}]} {
    %c0_i32 = arith.constant 0 : i32
    %0 = arith.cmpi eq, %arg1, %c0_i32 : i32
    %1 = arith.extui %0 : i1 to i32
    %c0_i32_0 = arith.constant 0 : i32
    %2 = arith.cmpi ne, %1, %c0_i32_0 : i32
    scf.if %2 {
      %cst_9 = arith.constant 0.000000e+00 : f32
      %13 = vector.broadcast %cst_9 : f32 to vector<64x8xf32>
      %c0_10 = arith.constant 0 : index
      %c0_11 = arith.constant 0 : index
      %14 = vector.load %arg12[%c0_10, %c0_11] : memref<64x8xf32, #tpu.memory_space<vmem>>, vector<64x8xf32>
      tpu.vector_store %arg12[%c0_10, %c0_11], %13 {strides = array<i32>} : memref<64x8xf32, #tpu.memory_space<vmem>>, vector<64x8xf32>,
    } else {
    }
    %c0 = arith.constant 0 : index
    %c0_1 = arith.constant 0 : index
    %3 = vector.load %arg2[%c0, %c0_1] : memref<64x128xi8, #tpu.memory_space<vmem>>, vector<64x128xi8>
    %4 = arith.sitofp %3 : vector<64x128xi8> to vector<64x128xf32>
    %c0_2 = arith.constant 0 : index
    %c0_3 = arith.constant 0 : index
    %5 = vector.load %arg12[%c0_2, %c0_3] : memref<64x8xf32, #tpu.memory_space<vmem>>, vector<64x8xf32>
    %c0_4 = arith.constant 0 : index
    %c0_5 = arith.constant 0 : index
    %6 = vector.load %arg3[%c0_4, %c0_5] : memref<128x8xf32, #tpu.memory_space<vmem>>, vector<128x8xf32>
    %cst = arith.constant dense<0.000000e+00> : vector<64x8xf32>
    %7 = tpu.matmul %4, %6, %cst {dimension_numbers = #tpu.dot_dimension_numbers<[1], [0], [0], [1], [0, 0, 1, 1], [], []>} : vector<64x128xf32>, vector<128x8xf32>, vector<64x8xf32> -> vector<64x8xf32>
    %8 = arith.addf %5, %7 : vector<64x8xf32>
    %c0_6 = arith.constant 0 : index
    %c0_7 = arith.constant 0 : index
    %9 = vector.load %arg12[%c0_6, %c0_7] : memref<64x8xf32, #tpu.memory_space<vmem>>, vector<64x8xf32>
    tpu.vector_store %arg12[%c0_6, %c0_7], %8 {strides = array<i32>} : memref<64x8xf32, #tpu.memory_space<vmem>>, vector<64x8xf32>,
    %c1_i32 = arith.constant 1 : i32
    %10 = arith.cmpi eq, %arg1, %c1_i32 : i32
    %11 = arith.extui %10 : i1 to i32
    %c0_i32_8 = arith.constant 0 : i32
    %12 = arith.cmpi ne, %11, %c0_i32_8 : i32
    scf.if %12 {
      %c0_9 = arith.constant 0 : index
      %c0_10 = arith.constant 0 : index
      %13 = vector.load %arg12[%c0_9, %c0_10] : memref<64x8xf32, #tpu.memory_space<vmem>>, vector<64x8xf32>
      %c0_11 = arith.constant 0 : index
      %c0_12 = arith.constant 0 : index
      %14 = vector.load %arg5[%c0_11, %c0_12] : memref<64x1xf32, #tpu.memory_space<vmem>>, vector<64x1xf32>
      %15 = vector.broadcast %14 : vector<64x1xf32> to vector<64x8xf32>
      %16 = arith.mulf %13, %15 : vector<64x8xf32>
      %c0_13 = arith.constant 0 : index
      %c0_14 = arith.constant 0 : index
      %17 = vector.load %arg7[%c0_13, %c0_14] : memref<8x128xf32, #tpu.memory_space<vmem>>, vector<8x128xf32>
      %cst_15 = arith.constant dense<0.000000e+00> : vector<64x128xf32>
      %18 = tpu.matmul %16, %17, %cst_15 {dimension_numbers = #tpu.dot_dimension_numbers<[1], [0], [0], [1], [0, 0, 1, 1], [], []>} : vector<64x8xf32>, vector<8x128xf32>, vector<64x128xf32> -> vector<64x128xf32>
      %c0_16 = arith.constant 0 : index
      %c0_17 = arith.constant 0 : index
      %19 = vector.load %arg4[%c0_16, %c0_17] : memref<64x8xf32, #tpu.memory_space<vmem>>, vector<64x8xf32>
      %c0_18 = arith.constant 0 : index
      %c0_19 = arith.constant 0 : index
      %20 = vector.load %arg8[%c0_18, %c0_19] : memref<8x128xf32, #tpu.memory_space<vmem>>, vector<8x128xf32>
      %cst_20 = arith.constant dense<0.000000e+00> : vector<64x128xf32>
      %21 = tpu.matmul %19, %20, %cst_20 {dimension_numbers = #tpu.dot_dimension_numbers<[1], [0], [0], [1], [0, 0, 1, 1], [], []>} : vector<64x8xf32>, vector<8x128xf32>, vector<64x128xf32> -> vector<64x128xf32>
      %22 = arith.addf %18, %21 : vector<64x128xf32>
      %c0_21 = arith.constant 0 : index
      %c0_22 = arith.constant 0 : index
      %23 = vector.load %arg9[%c0_21, %c0_22] : memref<1x128xf32, #tpu.memory_space<vmem>>, vector<1x128xf32>
      %24 = vector.broadcast %23 : vector<1x128xf32> to vector<64x128xf32>
      %25 = arith.addf %22, %24 : vector<64x128xf32>
      %c0_23 = arith.constant 0 : index
      %c0_24 = arith.constant 0 : index
      %26 = vector.load %arg10[%c0_23, %c0_24] : memref<64x128xf32, #tpu.memory_space<vmem>>, vector<64x128xf32>
      tpu.vector_store %arg10[%c0_23, %c0_24], %25 {strides = array<i32>} : memref<64x128xf32, #tpu.memory_space<vmem>>, vector<64x128xf32>,
      %c0_25 = arith.constant 0 : index
      %c0_26 = arith.constant 0 : index
      %27 = vector.load %arg6[%c0_25, %c0_26] : memref<64x1xf32, #tpu.memory_space<vmem>>, vector<64x1xf32>
      %28 = vector.broadcast %27 : vector<64x1xf32> to vector<64x128xf32>
      %29 = arith.mulf %25, %28 : vector<64x128xf32>
      %cst_27 = arith.constant dense<0.000000e+00> : vector<128xf32>
      %30 = vector.multi_reduction <add>, %29, %cst_27 [0] : vector<64x128xf32> to vector<128xf32>
      %31 = vector.shape_cast %30 : vector<128xf32> to vector<1x128xf32>
      %c0_28 = arith.constant 0 : index
      %c0_29 = arith.constant 0 : index
      %c0_30 = arith.constant 0 : index
      %32 = vector.load %arg11[%c0_28, %c0_29, %c0_30] : memref<1x2x128xf32, #tpu.memory_space<vmem>>, vector<1x1x128xf32>
      %33 = vector.shape_cast %32 : vector<1x1x128xf32> to vector<1x128xf32>
      %34 = vector.shape_cast %31 : vector<1x128xf32> to vector<1x1x128xf32>
      tpu.vector_store %arg11[%c0_28, %c0_29, %c0_30], %34 {strides = array<i32>} : memref<1x2x128xf32, #tpu.memory_space<vmem>>, vector<1x1x128xf32>,
      %35 = arith.mulf %29, %29 : vector<64x128xf32>
      %cst_31 = arith.constant dense<0.000000e+00> : vector<128xf32>
      %36 = vector.multi_reduction <add>, %35, %cst_31 [0] : vector<64x128xf32> to vector<128xf32>
      %37 = vector.shape_cast %36 : vector<128xf32> to vector<1x128xf32>
      %c0_32 = arith.constant 0 : index
      %c1 = arith.constant 1 : index
      %c0_33 = arith.constant 0 : index
      %38 = vector.load %arg11[%c0_32, %c1, %c0_33] : memref<1x2x128xf32, #tpu.memory_space<vmem>>, vector<1x1x128xf32>
      %39 = vector.shape_cast %38 : vector<1x1x128xf32> to vector<1x128xf32>
      %40 = vector.shape_cast %37 : vector<1x128xf32> to vector<1x1x128xf32>
      tpu.vector_store %arg11[%c0_32, %c1, %c0_33], %40 {strides = array<i32>} : memref<1x2x128xf32, #tpu.memory_space<vmem>>, vector<1x1x128xf32>,
    } else {
    }
    return
  }
  func.func @transform_0(%arg0: i32, %arg1: i32) -> (i32, i32) {
    %c0_i32 = arith.constant 0 : i32
    return %arg0, %arg1 : i32, i32
  }
  func.func @transform_1(%arg0: i32, %arg1: i32) -> (i32, i32) {
    %c0_i32 = arith.constant 0 : i32
    %c0_i32_0 = arith.constant 0 : i32
    return %arg1, %c0_i32 : i32, i32
  }
  func.func @transform_2(%arg0: i32, %arg1: i32) -> (i32, i32) {
    %c0_i32 = arith.constant 0 : i32
    %c0_i32_0 = arith.constant 0 : i32
    return %arg0, %c0_i32 : i32, i32
  }
  func.func @transform_3(%arg0: i32, %arg1: i32) -> (i32, i32) {
    %c0_i32 = arith.constant 0 : i32
    %c0_i32_0 = arith.constant 0 : i32
    return %arg0, %c0_i32 : i32, i32
  }
  func.func @transform_4(%arg0: i32, %arg1: i32) -> (i32, i32) {
    %c0_i32 = arith.constant 0 : i32
    %c0_i32_0 = arith.constant 0 : i32
    return %arg0, %c0_i32 : i32, i32
  }
  func.func @transform_5(%arg0: i32, %arg1: i32) -> (i32, i32) {
    %c0_i32 = arith.constant 0 : i32
    %c0_i32_0 = arith.constant 0 : i32
    %c0_i32_1 = arith.constant 0 : i32
    return %c0_i32, %c0_i32_0 : i32, i32
  }
  func.func @transform_6(%arg0: i32, %arg1: i32) -> (i32, i32) {
    %c0_i32 = arith.constant 0 : i32
    %c0_i32_0 = arith.constant 0 : i32
    %c0_i32_1 = arith.constant 0 : i32
    return %c0_i32, %c0_i32_0 : i32, i32
  }
  func.func @transform_7(%arg0: i32, %arg1: i32) -> (i32, i32) {
    %c0_i32 = arith.constant 0 : i32
    %c0_i32_0 = arith.constant 0 : i32
    %c0_i32_1 = arith.constant 0 : i32
    return %c0_i32, %c0_i32_0 : i32, i32
  }
  func.func @transform_8(%arg0: i32, %arg1: i32) -> (i32, i32) {
    %c0_i32 = arith.constant 0 : i32
    %c0_i32_0 = arith.constant 0 : i32
    return %arg0, %c0_i32 : i32, i32
  }
  func.func @transform_9(%arg0: i32, %arg1: i32) -> (i32, i32, i32) {
    %c0_i32 = arith.constant 0 : i32
    %c0_i32_0 = arith.constant 0 : i32
    %c0_i32_1 = arith.constant 0 : i32
    return %arg0, %c0_i32, %c0_i32_0 : i32, i32, i32
  }
}

</mosaic_0001>

<llo_original>
// kernel: tpu_custom_call.1
$region0: #{tpu_custom_call.1}
  #allocation0 [shape = 'u32[]', space=smem, size = 0x4, offset = 0x4, fixed_abs, tag = 'smem constant byte address 0x4 - core index']
  #allocation1 [shape = 'u32[144,128]{1,0:T(1,128)}', space=vmem, size = 0x12000, scoped, tag = 'internal scratch']
  #allocation2 [shape = 'f32[64,8]{1,0:T(8,128)}', space=vmem, size = 0x8000, scoped, tag = 'scratch operand']
  %s0 = inlined_call_operand.vmem [shape: s8[256,256], index: 0, kind: input, shape index: {}]
  %s1 = inlined_call_operand.vmem [shape: f32[256,8], index: 1, kind: input, shape index: {}]
  %s2 = inlined_call_operand.vmem [shape: f32[256,8], index: 2, kind: input, shape index: {}]
  %s3 = inlined_call_operand.vmem [shape: f32[256,1], index: 3, kind: input, shape index: {}]
  %s4 = inlined_call_operand.vmem [shape: f32[256,1], index: 4, kind: input, shape index: {}]
  %s5 = inlined_call_operand.vmem [shape: f32[8,128], index: 5, kind: input, shape index: {}]
  %s6 = inlined_call_operand.vmem [shape: f32[8,128], index: 6, kind: input, shape index: {}]
  %s7 = inlined_call_operand.vmem [shape: f32[1,128], index: 7, kind: input, shape index: {}]
  %s8 = inlined_call_operand.hbm [shape: f32[256,128], index: 8, kind: output, shape index: {0}]
  %s9 = inlined_call_operand.hbm [shape: f32[4,2,128], index: 9, kind: output, shape index: {1}]
  %10 = xla_tuple %s8, %s9
  %s11 = sld [smem:[#allocation0]]
  $region119: #{tpu_custom_call.1} parent=0
    _
  %s13 = ssub.s32 1, %s11
  %s14 = scalar_select 0, %s13, %s11
  $region1: #{tpu_custom_call.1} parent=0
    #allocation3 [shape = 'u8[16384]{0}', space=vmem, size = 0x4000, scoped, tag = 'input window, operand 0']
    #allocation4 [shape = 'u8[65536]{0}', space=vmem, size = 0x10000, scoped, tag = 'output window, operand 0']
    #allocation5 [shape = 's32[2]{0}', space=sflag, size = 0x8, scoped, tag = 'scoped memory for tpu_custom_call.1']
    #allocation6 [shape = 'u8[2048]{0}', space=vmem, size = 0x800, scoped, tag = 'output window, operand 1']
    #allocation7 [shape = 's32[2]{0}', space=sflag, size = 0x8, scoped, tag = 'scoped memory for tpu_custom_call.1']
    %15 = vsyncpa [#allocation5], 0
    %s16 = scalar_lea.sflag [#allocation5], 1
    %17 = vsyncpa %s16, 0
    %18 = vsyncpa [#allocation7], 0
    %s19 = scalar_lea.sflag [#allocation7], 1
    %20 = vsyncpa %s19, 0
    loop: start=0, step=1, limit=10
    $region2: #{tpu_custom_call.1} parent=1 // loop_pre_header
      _
    $region3: #{tpu_custom_call.1} parent=1 // loop_header
      %s22 = sphi 0, %s26
      %p23 = scmp.ge.s32.totalorder %s22, 10
      %s29 = sphi 0, %s41
      %s30 = sphi 0, %s37
      %s31 = sphi 0, %s29
      %s32 = sphi 0, %s30
      %s33 = sphi 0, %s31
      %s34 = sphi 0, %s32
      %s46 = sphi 0, %s48
      %s49 = sphi 0, %s46
      %s50 = sphi 0, %s49
      %s66 = sphi 0, %s50
      %s72 = sphi 0, %s74
      %s75 = sphi 0, %s72
      %s76 = sphi 0, %s75
      %s92 = sphi 0, %s76
      %s98 = sphi 0, %s100
      %s101 = sphi 0, %s98
      %s102 = sphi 0, %s101
      %s118 = sphi 0, %s102
      %s124 = sphi 0, %s126
      %s127 = sphi 0, %s124
      %s128 = sphi 0, %s127
      %s144 = sphi 0, %s128
      %s150 = sphi 0, %s152
      %s153 = sphi 0, %s150
      %s154 = sphi 0, %s153
      %s170 = sphi 0, %s154
      %s174 = sphi 0, %s174
      %s176 = sphi 0, %s174
      %s177 = sphi 0, %s176
      %s191 = sphi 0, %s177
      %s195 = sphi 0, %s195
      %s197 = sphi 0, %s195
      %s198 = sphi 0, %s197
      %s212 = sphi 0, %s198
      %s216 = sphi 0, %s216
      %s218 = sphi 0, %s216
      %s219 = sphi 0, %s218
      %s233 = sphi 0, %s219
      %s239 = sphi 0, %s241
      %s242 = sphi 0, %s239
      %s243 = sphi 0, %s242
      %s259 = sphi 0, %s243
      %s265 = sphi 0, %s267
      %s268 = sphi 0, %s265
      %s269 = sphi 0, %s268
      %s285 = sphi 0, %s269
    $region4: #{tpu_custom_call.1} parent=1 // loop_header_branch
      %25 = sbr.rel (%p23) target = $region8
    $region5: #{tpu_custom_call.1} parent=1 // loop_body
      %s27 = ssub.s32 %s22, 1
      %s28 = ssub.s32 %s22, 2
      %s35 = sadd.s32 1, %s30
      %p36 = scmp.ge.s32.totalorder %s35, 2
      %s37 = scalar_select %p36, 0, %s35
      %s38 = sadd.s32 1, %s29
      %s39 = scalar_select %p36, %s38, %s29
      %p40 = scmp.ge.s32.totalorder %s39, 4
      %s41 = scalar_select %p40, 0, %s39
      %s42 = ssub.s32 %s29, %s41
      %s43 = ssub.s32 %s30, %s37
      %s44 = sor.u32 %s42, %s43
      %p45 = scmp.eq.s32.totalorder %s44, 0
      %s47 = sadd.s32 %s46, 1
      %s48 = scalar_select %p45, %s46, %s47
      %p51 = pneg %p45
      %p52 = scmp.eq.s32.totalorder %s22, 7
      %p53 = por %p51, %p52
      %p54 = scmp.ne.s32.totalorder %s46, %s49
      %p55 = scmp.eq.s32.totalorder %s22, 0
      %p56 = por %p54, %p55
      %p57 = scmp.ne.s32.totalorder %s46, %s49
      %p58 = scmp.eq.s32.totalorder %s27, 7
      %p59 = por %p57, %p58
      %p60 = scmp.ne.s32.totalorder %s49, %s50
      %p61 = scmp.eq.s32.totalorder %s27, 0
      %p62 = por %p60, %p61
      %p63 = scmp.ne.s32.totalorder %s49, %s50
      %p64 = scmp.eq.s32.totalorder %s28, 7
      %p65 = por %p63, %p64
      %p67 = scmp.ne.s32.totalorder %s50, %s66
      %p68 = scmp.eq.s32.totalorder %s28, 0
      %p69 = por %p67, %p68
      %s70 = ssub.s32 %s30, %s37
      %p71 = scmp.eq.s32.totalorder %s70, 0
      %s73 = sadd.s32 %s72, 1
      %s74 = scalar_select %p71, %s72, %s73
      %p77 = pneg %p71
      %p78 = scmp.eq.s32.totalorder %s22, 7
      %p79 = por %p77, %p78
      %p80 = scmp.ne.s32.totalorder %s72, %s75
      %p81 = scmp.eq.s32.totalorder %s22, 0
      %p82 = por %p80, %p81
      %p83 = scmp.ne.s32.totalorder %s72, %s75
      %p84 = scmp.eq.s32.totalorder %s27, 7
      %p85 = por %p83, %p84
      %p86 = scmp.ne.s32.totalorder %s75, %s76
      %p87 = scmp.eq.s32.totalorder %s27, 0
      %p88 = por %p86, %p87
      %p89 = scmp.ne.s32.totalorder %s75, %s76
      %p90 = scmp.eq.s32.totalorder %s28, 7
      %p91 = por %p89, %p90
      %p93 = scmp.ne.s32.totalorder %s76, %s92
      %p94 = scmp.eq.s32.totalorder %s28, 0
      %p95 = por %p93, %p94
      %s96 = ssub.s32 %s29, %s41
      %p97 = scmp.eq.s32.totalorder %s96, 0
      %s99 = sadd.s32 %s98, 1
      %s100 = scalar_select %p97, %s98, %s99
      %p103 = pneg %p97
      %p104 = scmp.eq.s32.totalorder %s22, 7
      %p105 = por %p103, %p104
      %p106 = scmp.ne.s32.totalorder %s98, %s101
      %p107 = scmp.eq.s32.totalorder %s22, 0
      %p108 = por %p106, %p107
      %p109 = scmp.ne.s32.totalorder %s98, %s101
      %p110 = scmp.eq.s32.totalorder %s27, 7
      %p111 = por %p109, %p110
      %p112 = scmp.ne.s32.totalorder %s101, %s102
      %p113 = scmp.eq.s32.totalorder %s27, 0
      %p114 = por %p112, %p113
      %p115 = scmp.ne.s32.totalorder %s101, %s102
      %p116 = scmp.eq.s32.totalorder %s28, 7
      %p117 = por %p115, %p116
      %p119 = scmp.ne.s32.totalorder %s102, %s118
      %p120 = scmp.eq.s32.totalorder %s28, 0
      %p121 = por %p119, %p120
      %s122 = ssub.s32 %s29, %s41
      %p123 = scmp.eq.s32.totalorder %s122, 0
      %s125 = sadd.s32 %s124, 1
      %s126 = scalar_select %p123, %s124, %s125
      %p129 = pneg %p123
      %p130 = scmp.eq.s32.totalorder %s22, 7
      %p131 = por %p129, %p130
      %p132 = scmp.ne.s32.totalorder %s124, %s127
      %p133 = scmp.eq.s32.totalorder %s22, 0
      %p134 = por %p132, %p133
      %p135 = scmp.ne.s32.totalorder %s124, %s127
      %p136 = scmp.eq.s32.totalorder %s27, 7
      %p137 = por %p135, %p136
      %p138 = scmp.ne.s32.totalorder %s127, %s128
      %p139 = scmp.eq.s32.totalorder %s27, 0
      %p140 = por %p138, %p139
      %p141 = scmp.ne.s32.totalorder %s127, %s128
      %p142 = scmp.eq.s32.totalorder %s28, 7
      %p143 = por %p141, %p142
      %p145 = scmp.ne.s32.totalorder %s128, %s144
      %p146 = scmp.eq.s32.totalorder %s28, 0
      %p147 = por %p145, %p146
      %s148 = ssub.s32 %s29, %s41
      %p149 = scmp.eq.s32.totalorder %s148, 0
      %s151 = sadd.s32 %s150, 1
      %s152 = scalar_select %p149, %s150, %s151
      %p155 = pneg %p149
      %p156 = scmp.eq.s32.totalorder %s22, 7
      %p157 = por %p155, %p156
      %p158 = scmp.ne.s32.totalorder %s150, %s153
      %p159 = scmp.eq.s32.totalorder %s22, 0
      %p160 = por %p158, %p159
      %p161 = scmp.ne.s32.totalorder %s150, %s153
      %p162 = scmp.eq.s32.totalorder %s27, 7
      %p163 = por %p161, %p162
      %p164 = scmp.ne.s32.totalorder %s153, %s154
      %p165 = scmp.eq.s32.totalorder %s27, 0
      %p166 = por %p164, %p165
      %p167 = scmp.ne.s32.totalorder %s153, %s154
      %p168 = scmp.eq.s32.totalorder %s28, 7
      %p169 = por %p167, %p168
      %p171 = scmp.ne.s32.totalorder %s154, %s170
      %p172 = scmp.eq.s32.totalorder %s28, 0
      %p173 = por %p171, %p172
      %s175 = sadd.s32 %s174, 1
      %p178 = scmp.eq.s32.totalorder %s22, 7
      %p179 = scmp.ne.s32.totalorder %s174, %s176
      %p180 = scmp.eq.s32.totalorder %s22, 0
      %p181 = por %p179, %p180
      %p182 = scmp.ne.s32.totalorder %s174, %s176
      %p183 = scmp.eq.s32.totalorder %s27, 7
      %p184 = por %p182, %p183
      %p185 = scmp.ne.s32.totalorder %s176, %s177
      %p186 = scmp.eq.s32.totalorder %s27, 0
      %p187 = por %p185, %p186
      %p188 = scmp.ne.s32.totalorder %s176, %s177
      %p189 = scmp.eq.s32.totalorder %s28, 7
      %p190 = por %p188, %p189
      %p192 = scmp.ne.s32.totalorder %s177, %s191
      %p193 = scmp.eq.s32.totalorder %s28, 0
      %p194 = por %p192, %p193
      %s196 = sadd.s32 %s195, 1
      %p199 = scmp.eq.s32.totalorder %s22, 7
      %p200 = scmp.ne.s32.totalorder %s195, %s197
      %p201 = scmp.eq.s32.totalorder %s22, 0
      %p202 = por %p200, %p201
      %p203 = scmp.ne.s32.totalorder %s195, %s197
      %p204 = scmp.eq.s32.totalorder %s27, 7
      %p205 = por %p203, %p204
      %p206 = scmp.ne.s32.totalorder %s197, %s198
      %p207 = scmp.eq.s32.totalorder %s27, 0
      %p208 = por %p206, %p207
      %p209 = scmp.ne.s32.totalorder %s197, %s198
      %p210 = scmp.eq.s32.totalorder %s28, 7
      %p211 = por %p209, %p210
      %p213 = scmp.ne.s32.totalorder %s198, %s212
      %p214 = scmp.eq.s32.totalorder %s28, 0
      %p215 = por %p213, %p214
      %s217 = sadd.s32 %s216, 1
      %p220 = scmp.eq.s32.totalorder %s22, 7
      %p221 = scmp.ne.s32.totalorder %s216, %s218
      %p222 = scmp.eq.s32.totalorder %s22, 0
      %p223 = por %p221, %p222
      %p224 = scmp.ne.s32.totalorder %s216, %s218
      %p225 = scmp.eq.s32.totalorder %s27, 7
      %p226 = por %p224, %p225
      %p227 = scmp.ne.s32.totalorder %s218, %s219
      %p228 = scmp.eq.s32.totalorder %s27, 0
      %p229 = por %p227, %p228
      %p230 = scmp.ne.s32.totalorder %s218, %s219
      %p231 = scmp.eq.s32.totalorder %s28, 7
      %p232 = por %p230, %p231
      %p234 = scmp.ne.s32.totalorder %s219, %s233
      %p235 = scmp.eq.s32.totalorder %s28, 0
      %p236 = por %p234, %p235
      %s237 = ssub.s32 %s29, %s41
      %p238 = scmp.eq.s32.totalorder %s237, 0
      %s240 = sadd.s32 %s239, 1
      %s241 = scalar_select %p238, %s239, %s240
      %p244 = pneg %p238
      %p245 = scmp.eq.s32.totalorder %s22, 7
      %p246 = por %p244, %p245
      %p247 = scmp.ne.s32.totalorder %s239, %s242
      %p248 = scmp.eq.s32.totalorder %s22, 0
      %p249 = por %p247, %p248
      %p250 = scmp.ne.s32.totalorder %s239, %s242
      %p251 = scmp.eq.s32.totalorder %s27, 7
      %p252 = por %p250, %p251
      %p253 = scmp.ne.s32.totalorder %s242, %s243
      %p254 = scmp.eq.s32.totalorder %s27, 0
      %p255 = por %p253, %p254
      %p256 = scmp.ne.s32.totalorder %s242, %s243
      %p257 = scmp.eq.s32.totalorder %s28, 7
      %p258 = por %p256, %p257
      %p260 = scmp.ne.s32.totalorder %s243, %s259
      %p261 = scmp.eq.s32.totalorder %s28, 0
      %p262 = por %p260, %p261
      %s263 = ssub.s32 %s29, %s41
      %p264 = scmp.eq.s32.totalorder %s263, 0
      %s266 = sadd.s32 %s265, 1
      %s267 = scalar_select %p264, %s265, %s266
      %p270 = pneg %p264
      %p271 = scmp.eq.s32.totalorder %s22, 7
      %p272 = por %p270, %p271
      %p273 = scmp.ne.s32.totalorder %s265, %s268
      %p274 = scmp.eq.s32.totalorder %s22, 0
      %p275 = por %p273, %p274
      %p276 = scmp.ne.s32.totalorder %s265, %s268
      %p277 = scmp.eq.s32.totalorder %s27, 7
      %p278 = por %p276, %p277
      %p279 = scmp.ne.s32.totalorder %s268, %s269
      %p280 = scmp.eq.s32.totalorder %s27, 0
      %p281 = por %p279, %p280
      %p282 = scmp.ne.s32.totalorder %s268, %s269
      %p283 = scmp.eq.s32.totalorder %s28, 7
      %p284 = por %p282, %p283
      %p286 = scmp.ne.s32.totalorder %s269, %s285
      %p287 = scmp.eq.s32.totalorder %s28, 0
      %p288 = por %p286, %p287
      %p289 = scmp.le.s32.totalorder 1, %s22
      %p290 = scmp.lt.s32.totalorder %s22, 9
      %p291 = pnand %p289, %p290
      %p292 = pneg %p291
      // Predicated region
      $region9: #{tpu_custom_call.1} parent=5 // pred_check
        _
      $region10: #{tpu_custom_call.1} parent=5 // pred_check_branch
        %294 = sbr.rel (%p291) target = $region12
      $region11: #{tpu_custom_call.1} parent=5 // pred_region
        %s295 = ssub.s32 %s22, 1
        // Predicated region
        $region13: #{tpu_custom_call.1} parent=11 // pred_check
          %p296 = pneg %p187
        $region14: #{tpu_custom_call.1} parent=11 // pred_check_branch
          %298 = sbr.rel (%p296) target = $region16
        $region15: #{tpu_custom_call.1} parent=11 // pred_region
          _
        $region16: #{tpu_custom_call.1} parent=11 // pred_fallthru
          _
        // Predicated region
        $region17: #{tpu_custom_call.1} parent=11 // pred_check
          %p299 = pneg %p208
        $region18: #{tpu_custom_call.1} parent=11 // pred_check_branch
          %301 = sbr.rel (%p299) target = $region20
        $region19: #{tpu_custom_call.1} parent=11 // pred_region
          _
        $region20: #{tpu_custom_call.1} parent=11 // pred_fallthru
          _
        // Predicated region
        $region21: #{tpu_custom_call.1} parent=11 // pred_check
          %p302 = pneg %p229
        $region22: #{tpu_custom_call.1} parent=11 // pred_check_branch
          %304 = sbr.rel (%p302) target = $region24
        $region23: #{tpu_custom_call.1} parent=11 // pred_region
          _
        $region24: #{tpu_custom_call.1} parent=11 // pred_fallthru
          _
      $region12: #{tpu_custom_call.1} parent=5 // pred_fallthru
        _
      %p305 = scmp.lt.s32.totalorder %s22, 8
      // Predicated region
      $region25: #{tpu_custom_call.1} parent=5 // pred_check
        %p306 = pneg %p305
      $region26: #{tpu_custom_call.1} parent=5 // pred_check_branch
        %308 = sbr.rel (%p306) target = $region28
      $region27: #{tpu_custom_call.1} parent=5 // pred_region
        // Predicated region
        $region29: #{tpu_custom_call.1} parent=27 // pred_check
          %p309 = pneg %p56
        $region30: #{tpu_custom_call.1} parent=27 // pred_check_branch
          %311 = sbr.rel (%p309) target = $region32
        $region31: #{tpu_custom_call.1} parent=27 // pred_region
          %s312 = sand.u32 %s46, 1
          %s313 = sand.u32 %s46, 1
          %s314 = smul.addr %s313, 16
          %s315 = scalar_lea.vmem [#allocation3], %s314
          %s316 = smul.u32 2, %s29
          %s317 = smul.addr %s316, 2
          %s318 = sadd.s32 %s30, %s317
          %s319 = smul.addr %s318, 8
          %s320 = scalar_lea.vmem %s0, %s319
          // Predicated region
          $region33: #{tpu_custom_call.1} parent=31 // pred_check
            _
          $region34: #{tpu_custom_call.1} parent=31 // pred_check_branch
            %322 = sbr.rel (0) target = $region36
          $region35: #{tpu_custom_call.1} parent=31 // pred_region
            // Predicated region
            $region37: #{tpu_custom_call.1} parent=35 // pred_check
              _
            $region38: #{tpu_custom_call.1} parent=35 // pred_check_branch
              %324 = sbr.rel (0) target = $region40
            $region39: #{tpu_custom_call.1} parent=35 // pred_region
              // Predicated region
              $region52: #{tpu_custom_call.1} parent=39 // pred_check
                _
              $region53: #{tpu_custom_call.1} parent=39 // pred_check_branch
                %341 = sbr.rel (0) target = $region55
              $region54: #{tpu_custom_call.1} parent=39 // pred_region
                loop: start=0, step=1, limit=1
                $region56: #{tpu_custom_call.1} parent=54 // loop_pre_header
                  _
                $region57: #{tpu_custom_call.1} parent=54 // loop_header
                  %s343 = sphi 0, %s347
                  %p344 = scmp.ge.s32.totalorder %s343, 1
                  %s348 = sphi %s320, %s320
                  %s349 = sphi %s315, %s315
                $region58: #{tpu_custom_call.1} parent=54 // loop_header_branch
                  %346 = sbr.rel (%p344) target = $region62
                $region59: #{tpu_custom_call.1} parent=54 // loop_body
                  %v350 = vld [vmem:[%s348] sm:$0xff]
                  %351 = vst [vmem:[%s349] sm:$0xff] %v350
                  %v352 = vld [vmem:[%s348 + $0x10] sm:$0xff]
                  %353 = vst [vmem:[%s349 + $0x8] sm:$0xff] %v352
                $region60: #{tpu_custom_call.1} parent=54 // loop_footer
                  %s347 = sadd.s32 1, %s343
                $region61: #{tpu_custom_call.1} parent=54 // loop_footer_branch
                  %342 = sbr.rel target = $region57
                $region62: #{tpu_custom_call.1} parent=54 // loop_exit
                  _
              $region55: #{tpu_custom_call.1} parent=39 // pred_fallthru
                _
              // Predicated region
              $region63: #{tpu_custom_call.1} parent=39 // pred_check
                _
              $region64: #{tpu_custom_call.1} parent=39 // pred_check_branch
                %355 = sbr.rel target = $region66
              $region65: #{tpu_custom_call.1} parent=39 // pred_region
                _
              $region66: #{tpu_custom_call.1} parent=39 // pred_fallthru
                _
            $region40: #{tpu_custom_call.1} parent=35 // pred_fallthru
              _
            // Predicated region
            $region41: #{tpu_custom_call.1} parent=35 // pred_check
              _
            $region42: #{tpu_custom_call.1} parent=35 // pred_check_branch
              %326 = sbr.rel target = $region44
            $region43: #{tpu_custom_call.1} parent=35 // pred_region
              loop: start=0, step=1, limit=1
              $region45: #{tpu_custom_call.1} parent=43 // loop_pre_header
                _
              $region46: #{tpu_custom_call.1} parent=43 // loop_header
                %s329 = sphi 0, %s333
                %p330 = scmp.ge.s32.totalorder %s329, 1
                %s334 = sphi %s320, %s320
                %s335 = sphi %s315, %s315
              $region47: #{tpu_custom_call.1} parent=43 // loop_header_branch
                %332 = sbr.rel (%p330) target = $region51
              $region48: #{tpu_custom_call.1} parent=43 // loop_body
                %v336 = vld [vmem:[%s334] sm:$0xff]
                %337 = vst [vmem:[%s335] sm:$0xff] %v336
                %v338 = vld [vmem:[%s334 + $0x10] sm:$0xff]
                %339 = vst [vmem:[%s335 + $0x8] sm:$0xff] %v338
              $region49: #{tpu_custom_call.1} parent=43 // loop_footer
                %s333 = sadd.s32 1, %s329
              $region50: #{tpu_custom_call.1} parent=43 // loop_footer_branch
                %328 = sbr.rel target = $region46
              $region51: #{tpu_custom_call.1} parent=43 // loop_exit
                _
            $region44: #{tpu_custom_call.1} parent=35 // pred_fallthru
              _
          $region36: #{tpu_custom_call.1} parent=31 // pred_fallthru
            _
          %356 = vnop
        $region32: #{tpu_custom_call.1} parent=27 // pred_fallthru
          _
        // Predicated region
        $region67: #{tpu_custom_call.1} parent=27 // pred_check
          %p357 = pneg %p82
        $region68: #{tpu_custom_call.1} parent=27 // pred_check_branch
          %359 = sbr.rel (%p357) target = $region70
        $region69: #{tpu_custom_call.1} parent=27 // pred_region
          %s360 = smul.u32 16, %s30
          %p361 = scmp.lt.s32.totalorder %s360, 31
          %s362 = scalar_select %p361, %s360, 31
          %s363 = smul.addr %s362, 8
          %s364 = scalar_lea.vmem %s1, %s363
          %s365 = smul.u32 16, %s30
        $region70: #{tpu_custom_call.1} parent=27 // pred_fallthru
          _
        // Predicated region
        $region71: #{tpu_custom_call.1} parent=27 // pred_check
          %p366 = pneg %p108
        $region72: #{tpu_custom_call.1} parent=27 // pred_check_branch
          %368 = sbr.rel (%p366) target = $region74
        $region73: #{tpu_custom_call.1} parent=27 // pred_region
          %s369 = smul.u32 8, %s29
          %p370 = scmp.lt.s32.totalorder %s369, 31
          %s371 = scalar_select %p370, %s369, 31
          %s372 = smul.addr %s371, 8
          %s373 = scalar_lea.vmem %s2, %s372
          %s374 = smul.u32 8, %s29
        $region74: #{tpu_custom_call.1} parent=27 // pred_fallthru
          _
        // Predicated region
        $region75: #{tpu_custom_call.1} parent=27 // pred_check
          %p375 = pneg %p134
        $region76: #{tpu_custom_call.1} parent=27 // pred_check_branch
          %377 = sbr.rel (%p375) target = $region78
        $region77: #{tpu_custom_call.1} parent=27 // pred_region
          %s378 = smul.u32 8, %s29
          %p379 = scmp.lt.s32.totalorder %s378, 31
          %s380 = scalar_select %p379, %s378, 31
          %s381 = smul.addr %s380, 8
          %s382 = scalar_lea.vmem %s3, %s381
          %s383 = smul.u32 8, %s29
        $region78: #{tpu_custom_call.1} parent=27 // pred_fallthru
          _
        // Predicated region
        $region79: #{tpu_custom_call.1} parent=27 // pred_check
          %p384 = pneg %p160
        $region80: #{tpu_custom_call.1} parent=27 // pred_check_branch
          %386 = sbr.rel (%p384) target = $region82
        $region81: #{tpu_custom_call.1} parent=27 // pred_region
          %s387 = smul.u32 8, %s29
          %p388 = scmp.lt.s32.totalorder %s387, 31
          %s389 = scalar_select %p388, %s387, 31
          %s390 = smul.addr %s389, 8
          %s391 = scalar_lea.vmem %s4, %s390
          %s392 = smul.u32 8, %s29
        $region82: #{tpu_custom_call.1} parent=27 // pred_fallthru
          _
      $region28: #{tpu_custom_call.1} parent=5 // pred_fallthru
        _
      %p393 = scmp.le.s32.totalorder 1, %s22
      %p394 = scmp.lt.s32.totalorder %s22, 9
      %p395 = pnand %p393, %p394
      %p396 = pneg %p395
      // Predicated region
      $region83: #{tpu_custom_call.1} parent=5 // pred_check
        _
      $region84: #{tpu_custom_call.1} parent=5 // pred_check_branch
        %398 = sbr.rel (%p395) target = $region86
      $region85: #{tpu_custom_call.1} parent=5 // pred_region
        %s399 = ssub.s32 %s22, 1
        %s400 = sand.u32 %s49, 1
        %s401 = sand.u32 %s49, 1
        %s402 = smul.addr %s401, 16
        %s403 = scalar_lea.vmem [#allocation3], %s402
        // Predicated region
        $region87: #{tpu_custom_call.1} parent=85 // pred_check
          %p404 = pneg %p62
        $region88: #{tpu_custom_call.1} parent=85 // pred_check_branch
          %406 = sbr.rel (%p404) target = $region90
        $region89: #{tpu_custom_call.1} parent=85 // pred_region
          _
        $region90: #{tpu_custom_call.1} parent=85 // pred_fallthru
          _
        %s407 = sand.u32 %s49, 1
        %s408 = sand.u32 %s49, 1
        %s409 = smul.addr %s408, 16
        %s410 = scalar_lea.vmem [#allocation3], %s409
        %p411 = pneg %p62
        %p412 = pneg %p59
        %s413 = smul.u32 16, %s32
        %p414 = scmp.lt.s32.totalorder %s413, 31
        %s415 = scalar_select %p414, %s413, 31
        %s416 = smul.addr %s415, 8
        %s417 = scalar_lea.vmem %s1, %s416
        %p418 = pneg %p88
        %p419 = pneg %p85
        %s420 = smul.u32 8, %s31
        %p421 = scmp.lt.s32.totalorder %s420, 31
        %s422 = scalar_select %p421, %s420, 31
        %s423 = smul.addr %s422, 8
        %s424 = scalar_lea.vmem %s2, %s423
        %p425 = pneg %p114
        %p426 = pneg %p111
        %s427 = smul.u32 8, %s31
        %p428 = scmp.lt.s32.totalorder %s427, 31
        %s429 = scalar_select %p428, %s427, 31
        %s430 = smul.addr %s429, 8
        %s431 = scalar_lea.vmem %s3, %s430
        %p432 = pneg %p140
        %p433 = pneg %p137
        %s434 = smul.u32 8, %s31
        %p435 = scmp.lt.s32.totalorder %s434, 31
        %s436 = scalar_select %p435, %s434, 31
        %s437 = smul.addr %s436, 8
        %s438 = scalar_lea.vmem %s4, %s437
        %p439 = pneg %p166
        %p440 = pneg %p163
        %p441 = pneg %p187
        %p442 = pneg %p184
        %p443 = pneg %p208
        %p444 = pneg %p205
        %p445 = pneg %p229
        %p446 = pneg %p226
        %p447 = pneg %p255
        %p448 = pneg %p252
        %s449 = sand.u32 %s242, 1
        %s450 = scalar_lea.sflag [#allocation5], %s449
        %s451 = sand.u32 %s242, 1
        %s452 = smul.addr %s451, 64
        %s453 = scalar_lea.vmem [#allocation4], %s452
        %p454 = pneg %p281
        %p455 = pneg %p278
        %s456 = sand.u32 %s268, 1
        %s457 = scalar_lea.sflag [#allocation7], %s456
        %s458 = sand.u32 %s268, 1
        %s459 = smul.addr %s458, 2
        %s460 = scalar_lea.vmem [#allocation6], %s459
        %s461 = smul.u32 2, %s31
        %s462 = smul.u32 16, %s32
        %p463 = scmp.lt.s32.totalorder %s462, 31
        %s464 = scalar_select %p463, %s462, 31
        %s465 = smul.addr %s464, 8
        %s466 = scalar_lea.vmem %s1, %s465
        %s467 = smul.u32 16, %s32
        %s468 = smul.u32 8, %s31
        %p469 = scmp.lt.s32.totalorder %s468, 31
        %s470 = scalar_select %p469, %s468, 31
        %s471 = smul.addr %s470, 8
        %s472 = scalar_lea.vmem %s2, %s471
        %s473 = smul.u32 8, %s31
        %s474 = smul.u32 8, %s31
        %p475 = scmp.lt.s32.totalorder %s474, 31
        %s476 = scalar_select %p475, %s474, 31
        %s477 = smul.addr %s476, 8
        %s478 = scalar_lea.vmem %s3, %s477
        %s479 = smul.u32 8, %s31
        %s480 = smul.u32 8, %s31
        %p481 = scmp.lt.s32.totalorder %s480, 31
        %s482 = scalar_select %p481, %s480, 31
        %s483 = smul.addr %s482, 8
        %s484 = scalar_lea.vmem %s4, %s483
        %s485 = smul.u32 8, %s31
        %s486 = smul.u32 8, %s31
        %p487 = scmp.eq.s32.totalorder %s32, 0
        // Predicated region
        $region91: #{tpu_custom_call.1} parent=85 // pred_check
          %p488 = pneg %p487
        $region92: #{tpu_custom_call.1} parent=85 // pred_check_branch
          %490 = sbr.rel (%p488) target = $region94
        $region93: #{tpu_custom_call.1} parent=85 // pred_region
          %vm491 = vcmask 64512
          %492 = vst.msk [vmem:[#allocation2] sm:$0xff] %vm491, 0.0
          %493 = vst.msk [vmem:[#allocation2 + $0x8] sm:$0xff] %vm491, 0.0
          %494 = vst.msk [vmem:[#allocation2 + $0x10] sm:$0xff] %vm491, 0.0
          %495 = vst.msk [vmem:[#allocation2 + $0x18] sm:$0xff] %vm491, 0.0
          %496 = vst.msk [vmem:[#allocation2 + $0x20] sm:$0xff] %vm491, 0.0
          %497 = vst.msk [vmem:[#allocation2 + $0x28] sm:$0xff] %vm491, 0.0
          %498 = vst.msk [vmem:[#allocation2 + $0x30] sm:$0xff] %vm491, 0.0
          %499 = vst.msk [vmem:[#allocation2 + $0x38] sm:$0xff] %vm491, 0.0
        $region94: #{tpu_custom_call.1} parent=85 // pred_fallthru
          _
        %v500 = vld [vmem:[%s403] sm:$0xff]
        %v501 = vld [vmem:[%s403 + $0x8] sm:$0xff]
        %v502 = vunpack.c.0.s8 %v500
        %v503 = vunpack.c.1.s8 %v500
        %v504 = vunpack.c.2.s8 %v500
        %v505 = vunpack.c.3.s8 %v500
        %v506 = vunpack.c.0.s8 %v501
        %v507 = vunpack.c.1.s8 %v501
        %v508 = vunpack.c.2.s8 %v501
        %v509 = vunpack.c.3.s8 %v501
        %v510 = vcvt.s32.f32 %v502
        %v511 = vcvt.s32.f32 %v503
        %v512 = vcvt.s32.f32 %v504
        %v513 = vcvt.s32.f32 %v505
        %v514 = vcvt.s32.f32 %v506
        %v515 = vcvt.s32.f32 %v507
        %v516 = vcvt.s32.f32 %v508
        %v517 = vcvt.s32.f32 %v509
        %v518 = vld [vmem:[#allocation2] sm:$0xff]
        %v519 = vld [vmem:[#allocation2 + $0x8] sm:$0xff]
        %v520 = vld [vmem:[#allocation2 + $0x10] sm:$0xff]
        %v521 = vld [vmem:[#allocation2 + $0x18] sm:$0xff]
        %v522 = vld [vmem:[#allocation2 + $0x20] sm:$0xff]
        %v523 = vld [vmem:[#allocation2 + $0x28] sm:$0xff]
        %v524 = vld [vmem:[#allocation2 + $0x30] sm:$0xff]
        %v525 = vld [vmem:[#allocation2 + $0x38] sm:$0xff]
        %v526 = vld [vmem:[%s466] sm:$0xff]
        %v527 = vld [vmem:[%s466 + $0x8] sm:$0xff]
        %v528 = vld [vmem:[%s466 + $0x10] sm:$0xff]
        %v529 = vld [vmem:[%s466 + $0x18] sm:$0xff]
        %v530 = vld [vmem:[%s466 + $0x20] sm:$0xff]
        %v531 = vld [vmem:[%s466 + $0x28] sm:$0xff]
        %v532 = vld [vmem:[%s466 + $0x30] sm:$0xff]
        %v533 = vld [vmem:[%s466 + $0x38] sm:$0xff]
        %v534 = vld [vmem:[%s466 + $0x40] sm:$0xff]
        %v535 = vld [vmem:[%s466 + $0x48] sm:$0xff]
        %v536 = vld [vmem:[%s466 + $0x50] sm:$0xff]
        %v537 = vld [vmem:[%s466 + $0x58] sm:$0xff]
        %v538 = vld [vmem:[%s466 + $0x60] sm:$0xff]
        %v539 = vld [vmem:[%s466 + $0x68] sm:$0xff]
        %v540 = vld [vmem:[%s466 + $0x70] sm:$0xff]
        %v541 = vld [vmem:[%s466 + $0x78] sm:$0xff]
        %542 = vmatprep.subr.mxu0 0.0
        %543 = vmatpush1.msra.mxu0 %v526
        %544 = vmatprep.subr.mxu0 0.0
        %545 = vmatpush1.msra.mxu0 %v527
        %546 = vmatprep.subr.mxu0 0.0
        %547 = vmatpush1.msra.mxu0 %v528
        %548 = vmatprep.subr.mxu0 0.0
        %549 = vmatpush1.msra.mxu0 %v529
        %550 = vmatprep.subr.mxu0 0.0
        %551 = vmatpush1.msra.mxu0 %v530
        %552 = vmatprep.subr.mxu0 0.0
        %553 = vmatpush1.msra.mxu0 %v531
        %554 = vmatprep.subr.mxu0 0.0
        %555 = vmatpush1.msra.mxu0 %v532
        %556 = vmatprep.subr.mxu0 0.0
        %557 = vmatpush1.msra.mxu0 %v533
        %558 = vmatprep.subr.mxu0 0.0
        %559 = vmatpush1.msra.mxu0 %v534
        %560 = vmatprep.subr.mxu0 0.0
        %561 = vmatpush1.msra.mxu0 %v535
        %562 = vmatprep.subr.mxu0 0.0
        %563 = vmatpush1.msra.mxu0 %v536
        %564 = vmatprep.subr.mxu0 0.0
        %565 = vmatpush1.msra.mxu0 %v537
        %566 = vmatprep.subr.mxu0 0.0
        %567 = vmatpush1.msra.mxu0 %v538
        %568 = vmatprep.subr.mxu0 0.0
        %569 = vmatpush1.msra.mxu0 %v539
        %570 = vmatprep.subr.mxu0 0.0
        %571 = vmatpush1.msra.mxu0 %v540
        %572 = vmatprep.subr.mxu0 0.0
        %573 = vmatpush1.msra.mxu0 %v541
        %574 = vmatprep.subr.mxu0 0.0
        %575 = vmatpush1.msra.mxu0 0.0
        %576 = vmatprep.subr.mxu0 0.0
        %577 = vmatpush1.msra.mxu0 0.0
        %578 = vmatprep.subr.mxu0 0.0
        %579 = vmatpush1.msra.mxu0 0.0
        %580 = vmatprep.subr.mxu0 0.0
        %581 = vmatpush1.msra.mxu0 0.0
        %582 = vmatprep.subr.mxu0 0.0
        %583 = vmatpush1.msra.mxu0 0.0
        %584 = vmatprep.subr.mxu0 0.0
        %585 = vmatpush1.msra.mxu0 0.0
        %586 = vmatprep.subr.mxu0 0.0
        %587 = vmatpush1.msra.mxu0 0.0
        %588 = vmatprep.subr.mxu0 0.0
        %589 = vmatpush1.msra.mxu0 0.0
        %590 = vmatprep.subr.mxu0 0.0
        %591 = vmatpush1.msra.mxu0 0.0
        %592 = vmatprep.subr.mxu0 0.0
        %593 = vmatpush1.msra.mxu0 0.0
        %594 = vmatprep.subr.mxu0 0.0
        %595 = vmatpush1.msra.mxu0 0.0
        %596 = vmatprep.subr.mxu0 0.0
        %597 = vmatpush1.msra.mxu0 0.0
        %598 = vmatprep.subr.mxu0 0.0
        %599 = vmatpush1.msra.mxu0 0.0
        %600 = vmatprep.subr.mxu0 0.0
        %601 = vmatpush1.msra.mxu0 0.0
        %602 = vmatprep.subr.mxu0 0.0
        %603 = vmatpush1.msra.mxu0 0.0
        %604 = vmatprep.subr.mxu0 0.0
        %605 = vmatpush1.msra.mxu0 0.0
        %606 = vmatprep.mubr.f32.mxu0 0.0
        %607 = vmatmul.mubr.f32.gmra.mrb[0].mxu0 %v510
        %v608 = vpop.f32.mrb[0].mxu0
        %v609 = vadd.f32 0.0, %v608
        %v610 = vpop.f32.mrb[0].mxu0
        %611 = vmatprep.mubr.f32.mxu0 0.0
        %612 = vmatmul.mubr.f32.gmra.mrb[0].mxu0 %v511
        %v613 = vpop.f32.mrb[0].mxu0
        %v614 = vadd.f32 0.0, %v613
        %v615 = vpop.f32.mrb[0].mxu0
        %616 = vmatprep.mubr.f32.mxu0 0.0
        %617 = vmatmul.mubr.f32.gmra.mrb[0].mxu0 %v512
        %v618 = vpop.f32.mrb[0].mxu0
        %v619 = vadd.f32 0.0, %v618
        %v620 = vpop.f32.mrb[0].mxu0
        %621 = vmatprep.mubr.f32.mxu0 0.0
        %622 = vmatmul.mubr.f32.gmra.mrb[0].mxu0 %v513
        %v623 = vpop.f32.mrb[0].mxu0
        %v624 = vadd.f32 0.0, %v623
        %v625 = vpop.f32.mrb[0].mxu0
        %626 = vmatprep.mubr.f32.mxu0 0.0
        %627 = vmatmul.mubr.f32.gmra.mrb[0].mxu0 %v514
        %v628 = vpop.f32.mrb[0].mxu0
        %v629 = vadd.f32 0.0, %v628
        %v630 = vpop.f32.mrb[0].mxu0
        %631 = vmatprep.mubr.f32.mxu0 0.0
        %632 = vmatmul.mubr.f32.gmra.mrb[0].mxu0 %v515
        %v633 = vpop.f32.mrb[0].mxu0
        %v634 = vadd.f32 0.0, %v633
        %v635 = vpop.f32.mrb[0].mxu0
        %636 = vmatprep.mubr.f32.mxu0 0.0
        %637 = vmatmul.mubr.f32.gmra.mrb[0].mxu0 %v516
        %v638 = vpop.f32.mrb[0].mxu0
        %v639 = vadd.f32 0.0, %v638
        %v640 = vpop.f32.mrb[0].mxu0
        %641 = vmatprep.mubr.f32.mxu0 0.0
        %642 = vmatmul.mubr.f32.gmra.mrb[0].mxu0 %v517
        %v643 = vpop.f32.mrb[0].mxu0
        %v644 = vadd.f32 0.0, %v643
        %v645 = vpop.f32.mrb[0].mxu0
        %646 = vdwg.mxu0
        %v647 = vadd.f32 %v518, %v609
        %v648 = vadd.f32 %v519, %v614
        %v649 = vadd.f32 %v520, %v619
        %v650 = vadd.f32 %v521, %v624
        %v651 = vadd.f32 %v522, %v629
        %v652 = vadd.f32 %v523, %v634
        %v653 = vadd.f32 %v524, %v639
        %v654 = vadd.f32 %v525, %v644
        %vm655 = vcmask 64512
        %656 = vst.msk [vmem:[#allocation2] sm:$0xff] %vm655, %v647
        %657 = vst.msk [vmem:[#allocation2 + $0x8] sm:$0xff] %vm655, %v648
        %658 = vst.msk [vmem:[#allocation2 + $0x10] sm:$0xff] %vm655, %v649
        %659 = vst.msk [vmem:[#allocation2 + $0x18] sm:$0xff] %vm655, %v650
        %660 = vst.msk [vmem:[#allocation2 + $0x20] sm:$0xff] %vm655, %v651
        %661 = vst.msk [vmem:[#allocation2 + $0x28] sm:$0xff] %vm655, %v652
        %662 = vst.msk [vmem:[#allocation2 + $0x30] sm:$0xff] %vm655, %v653
        %663 = vst.msk [vmem:[#allocation2 + $0x38] sm:$0xff] %vm655, %v654
        %p664 = scmp.eq.s32.totalorder %s32, 1
        // Predicated region
        $region95: #{tpu_custom_call.1} parent=85 // pred_check
          %p665 = pneg %p664
        $region96: #{tpu_custom_call.1} parent=85 // pred_check_branch
          %667 = sbr.rel (%p665) target = $region98
        $region97: #{tpu_custom_call.1} parent=85 // pred_region
          %v668 = vld [vmem:[#allocation2] sm:$0xff]
          %v669 = vld [vmem:[#allocation2 + $0x8] sm:$0xff]
          %v670 = vld [vmem:[#allocation2 + $0x10] sm:$0xff]
          %v671 = vld [vmem:[#allocation2 + $0x18] sm:$0xff]
          %v672 = vld [vmem:[#allocation2 + $0x20] sm:$0xff]
          %v673 = vld [vmem:[#allocation2 + $0x28] sm:$0xff]
          %v674 = vld [vmem:[#allocation2 + $0x30] sm:$0xff]
          %v675 = vld [vmem:[#allocation2 + $0x38] sm:$0xff]
          %v676 = vld [vmem:[%s478] sm:$0xff]
          %v677 = vld [vmem:[%s478 + $0x8] sm:$0xff]
          %v678 = vld [vmem:[%s478 + $0x10] sm:$0xff]
          %v679 = vld [vmem:[%s478 + $0x18] sm:$0xff]
          %v680 = vld [vmem:[%s478 + $0x20] sm:$0xff]
          %v681 = vld [vmem:[%s478 + $0x28] sm:$0xff]
          %v682 = vld [vmem:[%s478 + $0x30] sm:$0xff]
          %v683 = vld [vmem:[%s478 + $0x38] sm:$0xff]
          %685 = vset.pattern.permute.xlu0 0
          %686 = vperm.xlu0 %685, %v676
          %v687 = vpop.permute.xlu0 %686
          %690 = vset.pattern.permute.xlu0 0
          %691 = vperm.xlu0 %690, %v677
          %v692 = vpop.permute.xlu0 %691
          %695 = vset.pattern.permute.xlu0 0
          %696 = vperm.xlu0 %695, %v678
          %v697 = vpop.permute.xlu0 %696
          %700 = vset.pattern.permute.xlu0 0
          %701 = vperm.xlu0 %700, %v679
          %v702 = vpop.permute.xlu0 %701
          %705 = vset.pattern.permute.xlu0 0
          %706 = vperm.xlu0 %705, %v680
          %v707 = vpop.permute.xlu0 %706
          %710 = vset.pattern.permute.xlu0 0
          %711 = vperm.xlu0 %710, %v681
          %v712 = vpop.permute.xlu0 %711
          %715 = vset.pattern.permute.xlu0 0
          %716 = vperm.xlu0 %715, %v682
          %v717 = vpop.permute.xlu0 %716
          %720 = vset.pattern.permute.xlu0 0
          %721 = vperm.xlu0 %720, %v683
          %v722 = vpop.permute.xlu0 %721
          %v724 = vmul.f32 %v668, %v687
          %v725 = vmul.f32 %v669, %v692
          %v726 = vmul.f32 %v670, %v697
          %v727 = vmul.f32 %v671, %v702
          %v728 = vmul.f32 %v672, %v707
          %v729 = vmul.f32 %v673, %v712
          %v730 = vmul.f32 %v674, %v717
          %v731 = vmul.f32 %v675, %v722
          %v732 = vld [vmem:[%s5] sm:$0xff]
          %v733 = vld [vmem:[%s472] sm:$0xff]
          %v734 = vld [vmem:[%s472 + $0x8] sm:$0xff]
          %v735 = vld [vmem:[%s472 + $0x10] sm:$0xff]
          %v736 = vld [vmem:[%s472 + $0x18] sm:$0xff]
          %v737 = vld [vmem:[%s472 + $0x20] sm:$0xff]
          %v738 = vld [vmem:[%s472 + $0x28] sm:$0xff]
          %v739 = vld [vmem:[%s472 + $0x30] sm:$0xff]
          %v740 = vld [vmem:[%s472 + $0x38] sm:$0xff]
          %v741 = vld [vmem:[%s6] sm:$0xff]
          %v743 = vsel %vm655, %v733, 0
          %v746 = vsel %vm655, %v734, 0
          %v749 = vsel %vm655, %v735, 0
          %v752 = vsel %vm655, %v736, 0
          %v755 = vsel %vm655, %v737, 0
          %v758 = vsel %vm655, %v738, 0
          %v761 = vsel %vm655, %v739, 0
          %v764 = vsel %vm655, %v740, 0
          %766 = vmatprep.subr.mxu0 0.0
          %767 = vmatpush1.msra.mxu0 %v741
          %768 = vmatprep.subr.mxu0 0.0
          %769 = vmatpush1.msra.mxu0 0.0
          %770 = vmatprep.subr.mxu0 0.0
          %771 = vmatpush1.msra.mxu0 0.0
          %772 = vmatprep.subr.mxu0 0.0
          %773 = vmatpush1.msra.mxu0 0.0
          %774 = vmatprep.subr.mxu0 0.0
          %775 = vmatpush1.msra.mxu0 0.0
          %776 = vmatprep.subr.mxu0 0.0
          %777 = vmatpush1.msra.mxu0 0.0
          %778 = vmatprep.subr.mxu0 0.0
          %779 = vmatpush1.msra.mxu0 0.0
          %780 = vmatprep.subr.mxu0 0.0
          %781 = vmatpush1.msra.mxu0 0.0
          %782 = vmatprep.subr.mxu0 0.0
          %783 = vmatpush1.msra.mxu0 0.0
          %784 = vmatprep.subr.mxu0 0.0
          %785 = vmatpush1.msra.mxu0 0.0
          %786 = vmatprep.subr.mxu0 0.0
          %787 = vmatpush1.msra.mxu0 0.0
          %788 = vmatprep.subr.mxu0 0.0
          %789 = vmatpush1.msra.mxu0 0.0
          %790 = vmatprep.subr.mxu0 0.0
          %791 = vmatpush1.msra.mxu0 0.0
          %792 = vmatprep.subr.mxu0 0.0
          %793 = vmatpush1.msra.mxu0 0.0
          %794 = vmatprep.subr.mxu0 0.0
          %795 = vmatpush1.msra.mxu0 0.0
          %796 = vmatprep.subr.mxu0 0.0
          %797 = vmatpush1.msra.mxu0 0.0
          %798 = vmatprep.subr.mxu0 0.0
          %799 = vmatpush1.msra.mxu0 0.0
          %800 = vmatprep.subr.mxu0 0.0
          %801 = vmatpush1.msra.mxu0 0.0
          %802 = vmatprep.subr.mxu0 0.0
          %803 = vmatpush1.msra.mxu0 0.0
          %804 = vmatprep.subr.mxu0 0.0
          %805 = vmatpush1.msra.mxu0 0.0
          %806 = vmatprep.subr.mxu0 0.0
          %807 = vmatpush1.msra.mxu0 0.0
          %808 = vmatprep.subr.mxu0 0.0
          %809 = vmatpush1.msra.mxu0 0.0
          %810 = vmatprep.subr.mxu0 0.0
          %811 = vmatpush1.msra.mxu0 0.0
          %812 = vmatprep.subr.mxu0 0.0
          %813 = vmatpush1.msra.mxu0 0.0
          %814 = vmatprep.subr.mxu0 0.0
          %815 = vmatpush1.msra.mxu0 0.0
          %816 = vmatprep.subr.mxu0 0.0
          %817 = vmatpush1.msra.mxu0 0.0
          %818 = vmatprep.subr.mxu0 0.0
          %819 = vmatpush1.msra.mxu0 0.0
          %820 = vmatprep.subr.mxu0 0.0
          %821 = vmatpush1.msra.mxu0 0.0
          %822 = vmatprep.subr.mxu0 0.0
          %823 = vmatpush1.msra.mxu0 0.0
          %824 = vmatprep.subr.mxu0 0.0
          %825 = vmatpush1.msra.mxu0 0.0
          %826 = vmatprep.subr.mxu0 0.0
          %827 = vmatpush1.msra.mxu0 0.0
          %828 = vmatprep.subr.mxu0 0.0
          %829 = vmatpush1.msra.mxu0 0.0
          %830 = vmatprep.mubr.f32.mxu0 0.0
          %831 = vmatmul.mubr.f32.gmra.mrb[0].mxu0 %v743
          %v832 = vpop.f32.mrb[0].mxu0
          %v833 = vadd.f32 0.0, %v832
          %v834 = vpop.f32.mrb[0].mxu0
          %835 = vmatprep.mubr.f32.mxu0 0.0
          %836 = vmatmul.mubr.f32.gmra.mrb[0].mxu0 %v746
          %v837 = vpop.f32.mrb[0].mxu0
          %v838 = vadd.f32 0.0, %v837
          %v839 = vpop.f32.mrb[0].mxu0
          %840 = vmatprep.mubr.f32.mxu0 0.0
          %841 = vmatmul.mubr.f32.gmra.mrb[0].mxu0 %v749
          %v842 = vpop.f32.mrb[0].mxu0
          %v843 = vadd.f32 0.0, %v842
          %v844 = vpop.f32.mrb[0].mxu0
          %845 = vmatprep.mubr.f32.mxu0 0.0
          %846 = vmatmul.mubr.f32.gmra.mrb[0].mxu0 %v752
          %v847 = vpop.f32.mrb[0].mxu0
          %v848 = vadd.f32 0.0, %v847
          %v849 = vpop.f32.mrb[0].mxu0
          %850 = vmatprep.mubr.f32.mxu0 0.0
          %851 = vmatmul.mubr.f32.gmra.mrb[0].mxu0 %v755
          %v852 = vpop.f32.mrb[0].mxu0
          %v853 = vadd.f32 0.0, %v852
          %v854 = vpop.f32.mrb[0].mxu0
          %855 = vmatprep.mubr.f32.mxu0 0.0
          %856 = vmatmul.mubr.f32.gmra.mrb[0].mxu0 %v758
          %v857 = vpop.f32.mrb[0].mxu0
          %v858 = vadd.f32 0.0, %v857
          %v859 = vpop.f32.mrb[0].mxu0
          %860 = vmatprep.mubr.f32.mxu0 0.0
          %861 = vmatmul.mubr.f32.gmra.mrb[0].mxu0 %v761
          %v862 = vpop.f32.mrb[0].mxu0
          %v863 = vadd.f32 0.0, %v862
          %v864 = vpop.f32.mrb[0].mxu0
          %865 = vmatprep.mubr.f32.mxu0 0.0
          %866 = vmatmul.mubr.f32.gmra.mrb[0].mxu0 %v764
          %v867 = vpop.f32.mrb[0].mxu0
          %v868 = vadd.f32 0.0, %v867
          %v869 = vpop.f32.mrb[0].mxu0
          %870 = vdwg.mxu0
          %v872 = vsel %vm655, %v724, 0
          %v875 = vsel %vm655, %v725, 0
          %v878 = vsel %vm655, %v726, 0
          %v881 = vsel %vm655, %v727, 0
          %v884 = vsel %vm655, %v728, 0
          %v887 = vsel %vm655, %v729, 0
          %v890 = vsel %vm655, %v730, 0
          %v893 = vsel %vm655, %v731, 0
          %895 = vmatprep.subr.mxu0 0.0
          %896 = vmatpush1.msra.mxu0 %v732
          %897 = vmatprep.subr.mxu0 0.0
          %898 = vmatpush1.msra.mxu0 0.0
          %899 = vmatprep.subr.mxu0 0.0
          %900 = vmatpush1.msra.mxu0 0.0
          %901 = vmatprep.subr.mxu0 0.0
          %902 = vmatpush1.msra.mxu0 0.0
          %903 = vmatprep.subr.mxu0 0.0
          %904 = vmatpush1.msra.mxu0 0.0
          %905 = vmatprep.subr.mxu0 0.0
          %906 = vmatpush1.msra.mxu0 0.0
          %907 = vmatprep.subr.mxu0 0.0
          %908 = vmatpush1.msra.mxu0 0.0
          %909 = vmatprep.subr.mxu0 0.0
          %910 = vmatpush1.msra.mxu0 0.0
          %911 = vmatprep.subr.mxu0 0.0
          %912 = vmatpush1.msra.mxu0 0.0
          %913 = vmatprep.subr.mxu0 0.0
          %914 = vmatpush1.msra.mxu0 0.0
          %915 = vmatprep.subr.mxu0 0.0
          %916 = vmatpush1.msra.mxu0 0.0
          %917 = vmatprep.subr.mxu0 0.0
          %918 = vmatpush1.msra.mxu0 0.0
          %919 = vmatprep.subr.mxu0 0.0
          %920 = vmatpush1.msra.mxu0 0.0
          %921 = vmatprep.subr.mxu0 0.0
          %922 = vmatpush1.msra.mxu0 0.0
          %923 = vmatprep.subr.mxu0 0.0
          %924 = vmatpush1.msra.mxu0 0.0
          %925 = vmatprep.subr.mxu0 0.0
          %926 = vmatpush1.msra.mxu0 0.0
          %927 = vmatprep.subr.mxu0 0.0
          %928 = vmatpush1.msra.mxu0 0.0
          %929 = vmatprep.subr.mxu0 0.0
          %930 = vmatpush1.msra.mxu0 0.0
          %931 = vmatprep.subr.mxu0 0.0
          %932 = vmatpush1.msra.mxu0 0.0
          %933 = vmatprep.subr.mxu0 0.0
          %934 = vmatpush1.msra.mxu0 0.0
          %935 = vmatprep.subr.mxu0 0.0
          %936 = vmatpush1.msra.mxu0 0.0
          %937 = vmatprep.subr.mxu0 0.0
          %938 = vmatpush1.msra.mxu0 0.0
          %939 = vmatprep.subr.mxu0 0.0
          %940 = vmatpush1.msra.mxu0 0.0
          %941 = vmatprep.subr.mxu0 0.0
          %942 = vmatpush1.msra.mxu0 0.0
          %943 = vmatprep.subr.mxu0 0.0
          %944 = vmatpush1.msra.mxu0 0.0
          %945 = vmatprep.subr.mxu0 0.0
          %946 = vmatpush1.msra.mxu0 0.0
          %947 = vmatprep.subr.mxu0 0.0
          %948 = vmatpush1.msra.mxu0 0.0
          %949 = vmatprep.subr.mxu0 0.0
          %950 = vmatpush1.msra.mxu0 0.0
          %951 = vmatprep.subr.mxu0 0.0
          %952 = vmatpush1.msra.mxu0 0.0
          %953 = vmatprep.subr.mxu0 0.0
          %954 = vmatpush1.msra.mxu0 0.0
          %955 = vmatprep.subr.mxu0 0.0
          %956 = vmatpush1.msra.mxu0 0.0
          %957 = vmatprep.subr.mxu0 0.0
          %958 = vmatpush1.msra.mxu0 0.0
          %959 = vmatprep.mubr.f32.mxu0 0.0
          %960 = vmatmul.mubr.f32.gmra.mrb[0].mxu0 %v872
          %v961 = vpop.f32.mrb[0].mxu0
          %v962 = vadd.f32 %v833, %v961
          %v963 = vpop.f32.mrb[0].mxu0
          %964 = vmatprep.mubr.f32.mxu0 0.0
          %965 = vmatmul.mubr.f32.gmra.mrb[0].mxu0 %v875
          %v966 = vpop.f32.mrb[0].mxu0
          %v967 = vadd.f32 %v838, %v966
          %v968 = vpop.f32.mrb[0].mxu0
          %969 = vmatprep.mubr.f32.mxu0 0.0
          %970 = vmatmul.mubr.f32.gmra.mrb[0].mxu0 %v878
          %v971 = vpop.f32.mrb[0].mxu0
          %v972 = vadd.f32 %v843, %v971
          %v973 = vpop.f32.mrb[0].mxu0
          %974 = vmatprep.mubr.f32.mxu0 0.0
          %975 = vmatmul.mubr.f32.gmra.mrb[0].mxu0 %v881
          %v976 = vpop.f32.mrb[0].mxu0
          %v977 = vadd.f32 %v848, %v976
          %v978 = vpop.f32.mrb[0].mxu0
          %979 = vmatprep.mubr.f32.mxu0 0.0
          %980 = vmatmul.mubr.f32.gmra.mrb[0].mxu0 %v884
          %v981 = vpop.f32.mrb[0].mxu0
          %v982 = vadd.f32 %v853, %v981
          %v983 = vpop.f32.mrb[0].mxu0
          %984 = vmatprep.mubr.f32.mxu0 0.0
          %985 = vmatmul.mubr.f32.gmra.mrb[0].mxu0 %v887
          %v986 = vpop.f32.mrb[0].mxu0
          %v987 = vadd.f32 %v858, %v986
          %v988 = vpop.f32.mrb[0].mxu0
          %989 = vmatprep.mubr.f32.mxu0 0.0
          %990 = vmatmul.mubr.f32.gmra.mrb[0].mxu0 %v890
          %v991 = vpop.f32.mrb[0].mxu0
          %v992 = vadd.f32 %v863, %v991
          %v993 = vpop.f32.mrb[0].mxu0
          %994 = vmatprep.mubr.f32.mxu0 0.0
          %995 = vmatmul.mubr.f32.gmra.mrb[0].mxu0 %v893
          %v996 = vpop.f32.mrb[0].mxu0
          %v997 = vadd.f32 %v868, %v996
          %v998 = vpop.f32.mrb[0].mxu0
          %999 = vdwg.mxu0
          %v1000 = vld [vmem:[%s7] sm:$0x1]
          %v1002 = vlaneseq
          %v1003 = vshrl.u32 %v1002, 7
          %v1004 = vsub.s32 0, %v1003
          %v1005 = vrot.slane %v1000, %v1004
          %v1007 = vadd.f32 %v962, %v1005
          %v1008 = vadd.f32 %v967, %v1005
          %v1009 = vadd.f32 %v972, %v1005
          %v1010 = vadd.f32 %v977, %v1005
          %v1011 = vadd.f32 %v982, %v1005
          %v1012 = vadd.f32 %v987, %v1005
          %v1013 = vadd.f32 %v992, %v1005
          %v1014 = vadd.f32 %v997, %v1005
          %1015 = vst [vmem:[%s453] sm:$0xff] %v1007
          %1016 = vst [vmem:[%s453 + $0x8] sm:$0xff] %v1008
          %1017 = vst [vmem:[%s453 + $0x10] sm:$0xff] %v1009
          %1018 = vst [vmem:[%s453 + $0x18] sm:$0xff] %v1010
          %1019 = vst [vmem:[%s453 + $0x20] sm:$0xff] %v1011
          %1020 = vst [vmem:[%s453 + $0x28] sm:$0xff] %v1012
          %1021 = vst [vmem:[%s453 + $0x30] sm:$0xff] %v1013
          %1022 = vst [vmem:[%s453 + $0x38] sm:$0xff] %v1014
          %v1023 = vld [vmem:[%s484] sm:$0xff]
          %v1024 = vld [vmem:[%s484 + $0x8] sm:$0xff]
          %v1025 = vld [vmem:[%s484 + $0x10] sm:$0xff]
          %v1026 = vld [vmem:[%s484 + $0x18] sm:$0xff]
          %v1027 = vld [vmem:[%s484 + $0x20] sm:$0xff]
          %v1028 = vld [vmem:[%s484 + $0x28] sm:$0xff]
          %v1029 = vld [vmem:[%s484 + $0x30] sm:$0xff]
          %v1030 = vld [vmem:[%s484 + $0x38] sm:$0xff]
          %1032 = vset.pattern.permute.xlu0 0
          %1033 = vperm.xlu0 %1032, %v1023
          %v1034 = vpop.permute.xlu0 %1033
          %1037 = vset.pattern.permute.xlu0 0
          %1038 = vperm.xlu0 %1037, %v1024
          %v1039 = vpop.permute.xlu0 %1038
          %1042 = vset.pattern.permute.xlu0 0
          %1043 = vperm.xlu0 %1042, %v1025
          %v1044 = vpop.permute.xlu0 %1043
          %1047 = vset.pattern.permute.xlu0 0
          %1048 = vperm.xlu0 %1047, %v1026
          %v1049 = vpop.permute.xlu0 %1048
          %1052 = vset.pattern.permute.xlu0 0
          %1053 = vperm.xlu0 %1052, %v1027
          %v1054 = vpop.permute.xlu0 %1053
          %1057 = vset.pattern.permute.xlu0 0
          %1058 = vperm.xlu0 %1057, %v1028
          %v1059 = vpop.permute.xlu0 %1058
          %1062 = vset.pattern.permute.xlu0 0
          %1063 = vperm.xlu0 %1062, %v1029
          %v1064 = vpop.permute.xlu0 %1063
          %1067 = vset.pattern.permute.xlu0 0
          %1068 = vperm.xlu0 %1067, %v1030
          %v1069 = vpop.permute.xlu0 %1068
          %v1071 = vmul.f32 %v1007, %v1034
          %v1072 = vmul.f32 %v1008, %v1039
          %v1073 = vmul.f32 %v1009, %v1044
          %v1074 = vmul.f32 %v1010, %v1049
          %v1075 = vmul.f32 %v1011, %v1054
          %v1076 = vmul.f32 %v1012, %v1059
          %v1077 = vmul.f32 %v1013, %v1064
          %v1078 = vmul.f32 %v1014, %v1069
          %v1079 = vadd.f32 %v1071, %v1072
          %v1080 = vadd.f32 %v1079, %v1073
          %v1081 = vadd.f32 %v1080, %v1074
          %v1082 = vadd.f32 %v1081, %v1075
          %v1083 = vadd.f32 %v1082, %v1076
          %v1084 = vadd.f32 %v1083, %v1077
          %v1085 = vadd.f32 %v1084, %v1078
          %v1086 = vrot.slane %v1085, 4
          %v1087 = vadd.f32 %v1085, %v1086
          %v1088 = vrot.slane %v1087, 2
          %v1089 = vadd.f32 %v1087, %v1088
          %v1090 = vrot.slane %v1089, 1
          %v1091 = vadd.f32 %v1089, %v1090
          %1092 = vst [vmem:[%s460] sm:$0x1] %v1091
          %v1093 = vmul.f32 %v1071, %v1071
          %v1094 = vmul.f32 %v1072, %v1072
          %v1095 = vmul.f32 %v1073, %v1073
          %v1096 = vmul.f32 %v1074, %v1074
          %v1097 = vmul.f32 %v1075, %v1075
          %v1098 = vmul.f32 %v1076, %v1076
          %v1099 = vmul.f32 %v1077, %v1077
          %v1100 = vmul.f32 %v1078, %v1078
          %v1101 = vadd.f32 %v1093, %v1094
          %v1102 = vadd.f32 %v1101, %v1095
          %v1103 = vadd.f32 %v1102, %v1096
          %v1104 = vadd.f32 %v1103, %v1097
          %v1105 = vadd.f32 %v1104, %v1098
          %v1106 = vadd.f32 %v1105, %v1099
          %v1107 = vadd.f32 %v1106, %v1100
          %v1108 = vrot.slane %v1107, 4
          %v1109 = vadd.f32 %v1107, %v1108
          %v1110 = vrot.slane %v1109, 2
          %v1111 = vadd.f32 %v1109, %v1110
          %v1112 = vrot.slane %v1111, 1
          %v1113 = vadd.f32 %v1111, %v1112
          %1114 = vst [vmem:[%s460 + $0x1] sm:$0x1] %v1113
        $region98: #{tpu_custom_call.1} parent=85 // pred_fallthru
          _
        %s1115 = sand.u32 %s242, 1
        %s1116 = scalar_lea.sflag [#allocation5], %s1115
        %s1117 = sand.u32 %s242, 1
        %s1118 = smul.addr %s1117, 64
        %s1119 = scalar_lea.vmem [#allocation4], %s1118
        %s1120 = sand.u32 %s268, 1
        %s1121 = scalar_lea.sflag [#allocation7], %s1120
        %s1122 = sand.u32 %s268, 1
        %s1123 = smul.addr %s1122, 2
        %s1124 = scalar_lea.vmem [#allocation6], %s1123
        // Predicated region
        $region99: #{tpu_custom_call.1} parent=85 // pred_check
          %p1125 = pneg %p252
        $region100: #{tpu_custom_call.1} parent=85 // pred_check_branch
          %1127 = sbr.rel (%p1125) target = $region102
        $region101: #{tpu_custom_call.1} parent=85 // pred_region
          %s1128 = smul.u32 8, %s31
          %s1130 = ssub.s32 1024, 1024
          %1131 = vsyncadd %s1116, %s1130
          %s1132 = smul.addr %s1128, 128
          %s1133 = scalar_lea.hbm %s8, %s1132
          %s1134 = sshll.u32 %s1119, 4
          %s1135 = int_to_ptr.vmem [resolvable:$true] %s1134
          %1140 = dma.vmem_to_hbm [thread:$0]  %s1135, 1024, %s1133, %s1116, 128, 128, 8
        $region102: #{tpu_custom_call.1} parent=85 // pred_fallthru
          _
        // Predicated region
        $region103: #{tpu_custom_call.1} parent=85 // pred_check
          %p1141 = pneg %p278
        $region104: #{tpu_custom_call.1} parent=85 // pred_check_branch
          %1143 = sbr.rel (%p1141) target = $region106
        $region105: #{tpu_custom_call.1} parent=85 // pred_region
          %s1145 = ssub.s32 32, 32
          %1146 = vsyncadd %s1121, %s1145
          %s1147 = smul.addr %s31, 32
          %s1148 = scalar_lea.hbm %s9, %s1147
          %s1150 = sshll.u32 %s1124, 4
          %s1151 = int_to_ptr.vmem [resolvable:$true] %s1150
          %1153 = dma.vmem_to_hbm [thread:$0]  %s1151, 32, %s1148, %s1121
        $region106: #{tpu_custom_call.1} parent=85 // pred_fallthru
          _
      $region86: #{tpu_custom_call.1} parent=5 // pred_fallthru
        _
      %p1154 = scmp.le.s32.totalorder 2, %s22
      // Predicated region
      $region107: #{tpu_custom_call.1} parent=5 // pred_check
        %p1155 = pneg %p1154
      $region108: #{tpu_custom_call.1} parent=5 // pred_check_branch
        %1157 = sbr.rel (%p1155) target = $region110
      $region109: #{tpu_custom_call.1} parent=5 // pred_region
        %s1158 = ssub.s32 %s22, 2
        // Predicated region
        $region111: #{tpu_custom_call.1} parent=109 // pred_check
          %p1159 = pneg %p258
        $region112: #{tpu_custom_call.1} parent=109 // pred_check_branch
          %1161 = sbr.rel (%p1159) target = $region114
        $region113: #{tpu_custom_call.1} parent=109 // pred_region
          %s1162 = sand.u32 %s243, 1
          %s1163 = scalar_lea.sflag [#allocation5], %s1162
          %s1164 = sand.u32 %s243, 1
          %s1165 = smul.addr %s1164, 64
          %s1166 = scalar_lea.vmem [#allocation4], %s1165
          %1167 = dma.done %s1163, 1024
        $region114: #{tpu_custom_call.1} parent=109 // pred_fallthru
          _
        // Predicated region
        $region115: #{tpu_custom_call.1} parent=109 // pred_check
          %p1168 = pneg %p284
        $region116: #{tpu_custom_call.1} parent=109 // pred_check_branch
          %1170 = sbr.rel (%p1168) target = $region118
        $region117: #{tpu_custom_call.1} parent=109 // pred_region
          %s1171 = sand.u32 %s269, 1
          %s1172 = scalar_lea.sflag [#allocation7], %s1171
          %s1173 = sand.u32 %s269, 1
          %s1174 = smul.addr %s1173, 2
          %s1175 = scalar_lea.vmem [#allocation6], %s1174
          %1176 = dma.done %s1172, 32
        $region118: #{tpu_custom_call.1} parent=109 // pred_fallthru
          _
      $region110: #{tpu_custom_call.1} parent=5 // pred_fallthru
        _
    $region6: #{tpu_custom_call.1} parent=1 // loop_footer
      %s26 = sadd.s32 1, %s22
    $region7: #{tpu_custom_call.1} parent=1 // loop_footer_branch
      %21 = sbr.rel target = $region3
    $region8: #{tpu_custom_call.1} parent=1 // loop_exit
      _
    %1177 = vsyncpa [#allocation5], 1
    %s1178 = scalar_lea.sflag [#allocation5], 1
    %1179 = vsyncpa %s1178, 1
    %1180 = vsyncpa [#allocation7], 1
    %s1181 = scalar_lea.sflag [#allocation7], 1
    %1182 = vsyncpa %s1181, 1

</llo_original>
